<compile_context>
chip_gen: v7x
topology: tpu7x:2x2x1
jax: 0.10.0
libtpu: 0.0.40
codegen_flags: <defaults>
</compile_context>

<pallas_src>
import jax
import jax.numpy as jnp
from jax import lax
from jax.experimental import pallas as pl
from jax.experimental.pallas import tpu as pltpu

LANES = 128
CHUNK = 64               # rows per in-kernel fori_loop step; a multiple of every
                         # dtype's sublane tile (8 f32 / 16 bf16 / 32 int8).
TILE_R_MAX = 8192        # rows per grid block: 4 MiB per f32 input block.
VMEM_LIMIT_BYTES = 32 * 1024 * 1024   # 24 MiB double-buffered f32 I/O + headroom;
                                      # safe on v7x's 64 MiB-per-TC VMEM.


def _round_down(x, m):
    return (x // m) * m


def _to_f32(v):
    # Two-step cast for narrow integer inputs (u8/i8 -> i32 -> f32).
    if jnp.issubdtype(v.dtype, jnp.integer):
        v = v.astype(jnp.int32)
    return v.astype(jnp.float32)


def _prep_flat(a):
    """Flatten row-major in native dtype; bool->uint8; pad to a LANES multiple.

    Fast path: no pad (hence no extra HBM copy) when size % 128 == 0, the
    typical case for affinity volumes.  Padded entries are zero in all three
    streams (mask = 0), so they contribute nothing to any statistic."""
    if a.dtype == jnp.bool_:
        a = a.astype(jnp.uint8)
    flat = a.reshape(-1)
    pad = (-flat.shape[0]) % LANES
    if pad:
        # TODO(synk): fallback full-copy pad; only hit when size % 128 != 0.
        flat = jnp.pad(flat, (0, pad))
    return flat


def _stats_jax(p, t, m):
    """Plain-JAX statistics for the small unaligned tail (< 2*tile_r rows)."""
    x, tt, mm = _to_f32(p), _to_f32(t), _to_f32(m)
    bce = jnp.maximum(x, 0.0) - x * tt + jnp.log1p(jnp.exp(-jnp.abs(x)))
    m_int = mm * (tt == 1.0)
    m_ext = mm - m_int                      # exact for binary affinity targets
    return jnp.stack([(m_int * bce).sum(), (m_ext * bce).sum(),
                      m_int.sum(), m_ext.sum()])


def _make_kernel(tile_r):
    n_chunks = tile_r // CHUNK
    g = CHUNK // 8

    def kernel(pred_ref, targ_ref, mask_ref, out_ref):
        i = pl.program_id(1)

        @pl.when(i == 0)
        def _init():
            out_ref[...] = jnp.zeros_like(out_ref)

        def rsum(v):                 # (CHUNK,128) -> (8,128): pure vreg adds
            return jnp.sum(v.reshape(g, 8, LANES), axis=0)

        def body(k, carry):
            li, le, ni, ne = carry
            r = pl.multiple_of(k * CHUNK, CHUNK)
            x = _to_f32(pred_ref[pl.ds(r, CHUNK), :])
            tt = _to_f32(targ_ref[pl.ds(r, CHUNK), :])
            mm = _to_f32(mask_ref[pl.ds(r, CHUNK), :])
            # Numerically stable BCE-with-logits (VPU + EUP elementwise).
            bce = jnp.maximum(x, 0.0) - x * tt + jnp.log1p(jnp.exp(-jnp.abs(x)))
            m_int = mm * (tt == 1.0).astype(jnp.float32)
            m_ext = mm - m_int       # exact for binary affinity targets
            return (li + rsum(m_int * bce), le + rsum(m_ext * bce),
                    ni + rsum(m_int), ne + rsum(m_ext))

        # 64-row chunks bound live ranges to ~50 vregs: no VMEM temporaries.
        zero = jnp.zeros((8, LANES), jnp.float32)
        li, le, ni, ne = lax.fori_loop(0, n_chunks, body, (zero, zero, zero, zero))
        # Per-lane f32 accumulation is exact up to ~2^24 terms per lane
        # (~17e9 elements per edge) -- far beyond practical volumes.
        out_ref[0] += li
        out_ref[1] += le
        out_ref[2] += ni
        out_ref[3] += ne

    return kernel


def edge_stats(pred, target, mask, *, tile_r_max=TILE_R_MAX):
    """(sum(m_int*bce), sum(m_ext*bce), sum(m_int), sum(m_ext)) for one edge.

    m_int = mask*(target==1), m_ext = mask - m_int (binary targets).  The
    exactly-tiled body is reduced by the Pallas kernel on an always-even
    (2, tiles_per_core) grid; the remainder is reduced in plain JAX so the hot
    loop has no ragged-tile masking and v7x's 2-core split never degrades."""
    assert pred.size == target.size == mask.size
    p, t, m = _prep_flat(pred), _prep_flat(target), _prep_flat(mask)
    n = p.shape[0]                         # multiple of LANES
    rows = n // LANES

    n_cores = 2                            # v7x TC split; serial loop on v5e/v6e
    tile_r = _round_down(min(int(tile_r_max), rows // n_cores), CHUNK)
    if tile_r == 0:
        n_cores = 1
        tile_r = _round_down(min(int(tile_r_max), rows), CHUNK)

    stats = jnp.zeros((4,), jnp.float32)
    body_rows = 0
    if tile_r > 0:
        tiles_per_core = rows // (n_cores * tile_r)       # >= 1 by construction
        body_rows = n_cores * tiles_per_core * tile_r
        # The FULL reshaped arrays are passed (no body slice/copy); the grid
        # only covers [0, body_rows), so every block is fully in-bounds.
        p2 = p.reshape(rows, LANES)
        t2 = t.reshape(rows, LANES)
        m2 = m.reshape(rows, LANES)
        in_spec = pl.BlockSpec((tile_r, LANES),
                               lambda c, i: (c * tiles_per_core + i, 0))
        out = pl.pallas_call(
            _make_kernel(tile_r),
            out_shape=jax.ShapeDtypeStruct((n_cores * 4, 8, LANES), jnp.float32),
            grid_spec=pltpu.PrefetchScalarGridSpec(
                num_scalar_prefetch=0,
                grid=(n_cores, tiles_per_core),
                # Default double buffering hides DMA at these block sizes; sweep
                # pipeline_mode=pl.Buffered(3) only if a profile shows exposed DMA.
                in_specs=[in_spec, in_spec, in_spec],
                out_specs=pl.BlockSpec((4, 8, LANES), lambda c, i: (c, 0, 0)),
            ),
            compiler_params=pltpu.CompilerParams(
                # "parallel" lets v7x shard the outer axis across its two
                # TensorCores (pltpu.CORE_PARALLEL is the explicit alternative);
                # on single-core v5e/v6e it is just a serial loop.
                dimension_semantics=("parallel", "arbitrary"),
                vmem_limit_bytes=VMEM_LIMIT_BYTES,
            ),
        )(p2, t2, m2)
        # Tiny cross-core / sublane / lane reduction in plain JAX.
        stats = out.reshape(n_cores, 4, 8, LANES).sum(axis=(0, 2, 3))

    body_elems = body_rows * LANES
    if body_elems < n:                      # small tail (< 2*tile_r rows)
        stats = stats + _stats_jax(p[body_elems:], t[body_elems:], m[body_elems:])
    return stats[0], stats[1], stats[2], stats[3]


def edge_crf_forward(preds, targets, masks, *, size_average=False,
                     class_balancing=False, tile_r_max=TILE_R_MAX):
    """JAX/Pallas equivalent of EdgeCRF.forward (masked-BCE criterion).

    Tip: pass targets/masks as uint8/bool — the kernel streams native dtypes
    and upcasts in-register, cutting HBM traffic from 12 to 6 B/element."""
    assert len(preds) == len(targets) == len(masks)
    loss = jnp.float32(0.0)
    nmsk = jnp.float32(0.0)
    for pred, target, mask in zip(preds, targets, masks):
        li, le, ni, ne = edge_stats(pred, target, mask, tile_r_max=tile_r_max)
        if class_balancing:
            tot = ni + ne
            both = jnp.logical_and(ni > 0, ne > 0)
            tot_safe = jnp.where(tot > 0, tot, 1.0)
            w_int = jnp.where(both, ne / tot_safe, 1.0)
            w_ext = jnp.where(both, ni / tot_safe, 1.0)
            loss = loss + w_int * li + w_ext * le
            nmsk = nmsk + w_int * ni + w_ext * ne
        else:
            # Binary affinity targets: sum(m*bce) = li+le, sum(m) = ni+ne.
            loss = loss + li + le
            nmsk = nmsk + ni + ne

    loss = jnp.where(nmsk == 0, jnp.float32(0.0), loss)
    if size_average:
        loss = jnp.where(nmsk > 0, loss / jnp.where(nmsk > 0, nmsk, 1.0), loss)
        nmsk = jnp.where(nmsk > 0, jnp.ones_like(nmsk), nmsk)
    return loss, nmsk


# ---------------- pure-JAX reference (for verification only) ----------------
def _ref_forward(preds, targets, masks, *, size_average, class_balancing):
    loss, nmsk = 0.0, 0.0
    for x, t, m in zip(preds, targets, masks):
        x = x.astype(jnp.float32)
        t = t.astype(jnp.float32)
        m = m.astype(jnp.float32)
        if class_balancing:
            m_int = m * (t == 1.0)
            m_ext = m * (t == 0.0)
            n_int = float(m_int.sum())
            n_ext = float(m_ext.sum())
            if n_int > 0 and n_ext > 0:
                m_int = m_int * (n_ext / (n_int + n_ext))
                m_ext = m_ext * (n_int / (n_int + n_ext))
            m = m_int + m_ext
        bce = jnp.maximum(x, 0.0) - x * t + jnp.log1p(jnp.exp(-jnp.abs(x)))
        loss = loss + float((m * bce).sum())
        nmsk = nmsk + float(m.sum())
    if nmsk == 0:
        return 0.0, nmsk
    if size_average:
        loss = loss / nmsk
        nmsk = 1.0
    return loss, nmsk


if __name__ == "__main__":
    key = jax.random.PRNGKey(0)
    # (shape, target/mask dtype).  Chosen to cover: 2-core exact tiling with
    # uint8 targets/masks, the plain-JAX row tail, the 128-pad fallback with a
    # single-core grid, and the tiny all-JAX path.  The small-tile override in
    # the loop below additionally forces multi-tile accumulation per core.
    edge_cfgs = [
        ((2, 3, 8, 32, 128), jnp.uint8),
        ((2, 3, 8, 27, 128), jnp.float32),
        ((2, 1, 40, 131), jnp.float32),
        ((2, 2, 7, 9), jnp.float32),
    ]

    preds, targets, masks = [], [], []
    for shape, tm_dtype in edge_cfgs:
        key, k1, k2, k3 = jax.random.split(key, 4)
        preds.append(jax.random.normal(k1, shape, dtype=jnp.float32))
        targets.append(jax.random.bernoulli(k2, 0.5, shape).astype(tm_dtype))
        masks.append(jax.random.bernoulli(k3, 0.8, shape).astype(tm_dtype))

    ok = True
    for cb, sa in [(False, False), (True, False), (False, True), (True, True)]:
        ref_loss, ref_nmsk = _ref_forward(preds, targets, masks,
                                          size_average=sa, class_balancing=cb)
        # Default big tiles, plus a small-tile override that exercises the
        # multi-tile / 2-core accumulation paths on these small demo inputs.
        for trm in (TILE_R_MAX, 256):
            loss, nmsk = edge_crf_forward(preds, targets, masks,
                                          size_average=sa, class_balancing=cb,
                                          tile_r_max=trm)
            loss, nmsk = jax.block_until_ready((loss, nmsk))
            ok &= abs(float(loss) - ref_loss) <= 1e-3 * max(1.0, abs(ref_loss))
            ok &= abs(float(nmsk) - ref_nmsk) <= 1e-3 * max(1.0, abs(ref_nmsk))

    if ok:
        print("KERNEL_OK")
    else:
        print("MISMATCH")
</pallas_src>

<mosaic_0001>
module attributes {stable_mosaic.version = 11 : i64} {
  func.func @kernel(%arg0: i32, %arg1: i32, %arg2: memref<768x128xf32, #tpu.memory_space<vmem>>, %arg3: memref<768x128xi8, #tpu.memory_space<vmem>>, %arg4: memref<768x128xi8, #tpu.memory_space<vmem>>, %arg5: memref<4x8x128xf32, #tpu.memory_space<vmem>>) attributes {dimension_semantics = [#tpu.dimension_semantics<parallel>, #tpu.dimension_semantics<arbitrary>], iteration_bounds = array<i64: 2, 1>, scalar_prefetch = 0 : i64, scratch_operands = 0 : i64, tpu.core_type = #tpu.core_type<tc>, window_params = [{transform_indices = @transform_0, window_bounds = array<i64: 768, 128>}, {transform_indices = @transform_1, window_bounds = array<i64: 768, 128>}, {transform_indices = @transform_2, window_bounds = array<i64: 768, 128>}, {transform_indices = @transform_3, window_bounds = array<i64: 4, 8, 128>}]} {
    %c0_i32 = arith.constant 0 : i32
    %0 = arith.cmpi eq, %arg1, %c0_i32 : i32
    %1 = arith.extui %0 : i1 to i32
    %c0_i32_0 = arith.constant 0 : i32
    %2 = arith.cmpi ne, %1, %c0_i32_0 : i32
    scf.if %2 {
      %cst_23 = arith.constant 0.000000e+00 : f32
      %30 = vector.broadcast %cst_23 : f32 to vector<4x8x128xf32>
      %c0_24 = arith.constant 0 : index
      %c0_25 = arith.constant 0 : index
      %c0_26 = arith.constant 0 : index
      %31 = vector.load %arg5[%c0_24, %c0_25, %c0_26] : memref<4x8x128xf32, #tpu.memory_space<vmem>>, vector<4x8x128xf32>
      tpu.vector_store %arg5[%c0_24, %c0_25, %c0_26], %30 {strides = array<i32>} : memref<4x8x128xf32, #tpu.memory_space<vmem>>, vector<4x8x128xf32>,
    } else {
    }
    %cst = arith.constant 0.000000e+00 : f32
    %3 = vector.broadcast %cst : f32 to vector<8x128xf32>
    %c0_i32_1 = arith.constant 0 : i32
    %c12_i32 = arith.constant 12 : i32
    %4 = arith.addi %c0_i32_1, %c12_i32 : i32
    %c1_i32 = arith.constant 1 : i32
    %5:4 = scf.for %arg6 = %c0_i32_1 to %4 step %c1_i32 iter_args(%arg7 = %3, %arg8 = %3, %arg9 = %3, %arg10 = %3) -> (vector<8x128xf32>, vector<8x128xf32>, vector<8x128xf32>, vector<8x128xf32>)  : i32 {
      %c64_i32 = arith.constant 64 : i32
      %30 = arith.muli %arg6, %c64_i32 : i32
      %31 = tpu.assume_multiple %30, 64 : i32
      %32 = arith.index_cast %31 : i32 to index
      %c0_23 = arith.constant 0 : index
      %33 = vector.load %arg2[%32, %c0_23] : memref<768x128xf32, #tpu.memory_space<vmem>>, vector<64x128xf32>
      %34 = arith.index_cast %31 : i32 to index
      %c0_24 = arith.constant 0 : index
      %35 = vector.load %arg3[%34, %c0_24] : memref<768x128xi8, #tpu.memory_space<vmem>>, vector<64x128xi8>
      %36 = arith.extui %35 : vector<64x128xi8> to vector<64x128xi32>
      %37 = arith.sitofp %36 : vector<64x128xi32> to vector<64x128xf32>
      %38 = arith.index_cast %31 : i32 to index
      %c0_25 = arith.constant 0 : index
      %39 = vector.load %arg4[%38, %c0_25] : memref<768x128xi8, #tpu.memory_space<vmem>>, vector<64x128xi8>
      %40 = arith.extui %39 : vector<64x128xi8> to vector<64x128xi32>
      %41 = arith.sitofp %40 : vector<64x128xi32> to vector<64x128xf32>
      %cst_26 = arith.constant 0.000000e+00 : f32
      %42 = vector.broadcast %cst_26 : f32 to vector<64x128xf32>
      %43 = arith.maximumf %33, %42 : vector<64x128xf32>
      %44 = arith.mulf %33, %37 : vector<64x128xf32>
      %45 = arith.subf %43, %44 : vector<64x128xf32>
      %46 = math.absf %33 : vector<64x128xf32>
      %cst_27 = arith.constant 0.000000e+00 : f32
      %47 = vector.broadcast %cst_27 : f32 to vector<64x128xf32>
      %48 = arith.subf %47, %46 : vector<64x128xf32>
      %49 = math.exp %48 : vector<64x128xf32>
      %50 = math.log1p %49 : vector<64x128xf32>
      %51 = arith.addf %45, %50 : vector<64x128xf32>
      %cst_28 = arith.constant 1.000000e+00 : f32
      %52 = vector.broadcast %cst_28 : f32 to vector<64x128xf32>
      %53 = arith.cmpf oeq, %37, %52 : vector<64x128xf32>
      %54 = arith.extui %53 : vector<64x128xi1> to vector<64x128xi32>
      %55 = arith.sitofp %54 : vector<64x128xi32> to vector<64x128xf32>
      %56 = arith.mulf %41, %55 : vector<64x128xf32>
      %57 = arith.subf %41, %56 : vector<64x128xf32>
      %58 = arith.mulf %56, %51 : vector<64x128xf32>
      %59 = vector.shape_cast %58 : vector<64x128xf32> to vector<8x8x128xf32>
      %cst_29 = arith.constant dense<0.000000e+00> : vector<8x128xf32>
      %60 = vector.multi_reduction <add>, %59, %cst_29 [0] : vector<8x8x128xf32> to vector<8x128xf32>
      %61 = arith.addf %arg7, %60 : vector<8x128xf32>
      %62 = arith.mulf %57, %51 : vector<64x128xf32>
      %63 = vector.shape_cast %62 : vector<64x128xf32> to vector<8x8x128xf32>
      %cst_30 = arith.constant dense<0.000000e+00> : vector<8x128xf32>
      %64 = vector.multi_reduction <add>, %63, %cst_30 [0] : vector<8x8x128xf32> to vector<8x128xf32>
      %65 = arith.addf %arg8, %64 : vector<8x128xf32>
      %66 = vector.shape_cast %56 : vector<64x128xf32> to vector<8x8x128xf32>
      %cst_31 = arith.constant dense<0.000000e+00> : vector<8x128xf32>
      %67 = vector.multi_reduction <add>, %66, %cst_31 [0] : vector<8x8x128xf32> to vector<8x128xf32>
      %68 = arith.addf %arg9, %67 : vector<8x128xf32>
      %69 = vector.shape_cast %57 : vector<64x128xf32> to vector<8x8x128xf32>
      %cst_32 = arith.constant dense<0.000000e+00> : vector<8x128xf32>
      %70 = vector.multi_reduction <add>, %69, %cst_32 [0] : vector<8x8x128xf32> to vector<8x128xf32>
      %71 = arith.addf %arg10, %70 : vector<8x128xf32>
      scf.yield %61, %65, %68, %71 : vector<8x128xf32>, vector<8x128xf32>, vector<8x128xf32>, vector<8x128xf32>
    }
    %c12_i32_2 = arith.constant 12 : i32
    %c0 = arith.constant 0 : index
    %c0_3 = arith.constant 0 : index
    %c0_4 = arith.constant 0 : index
    %6 = vector.load %arg5[%c0, %c0_3, %c0_4] : memref<4x8x128xf32, #tpu.memory_space<vmem>>, vector<1x8x128xf32>
    %7 = vector.shape_cast %6 : vector<1x8x128xf32> to vector<8x128xf32>
    %8 = arith.addf %7, %5#0 : vector<8x128xf32>
    %c0_5 = arith.constant 0 : index
    %c0_6 = arith.constant 0 : index
    %c0_7 = arith.constant 0 : index
    %9 = vector.load %arg5[%c0_5, %c0_6, %c0_7] : memref<4x8x128xf32, #tpu.memory_space<vmem>>, vector<1x8x128xf32>
    %10 = vector.shape_cast %9 : vector<1x8x128xf32> to vector<8x128xf32>
    %11 = vector.shape_cast %8 : vector<8x128xf32> to vector<1x8x128xf32>
    tpu.vector_store %arg5[%c0_5, %c0_6, %c0_7], %11 {strides = array<i32>} : memref<4x8x128xf32, #tpu.memory_space<vmem>>, vector<1x8x128xf32>,
    %c1 = arith.constant 1 : index
    %c0_8 = arith.constant 0 : index
    %c0_9 = arith.constant 0 : index
    %12 = vector.load %arg5[%c1, %c0_8, %c0_9] : memref<4x8x128xf32, #tpu.memory_space<vmem>>, vector<1x8x128xf32>
    %13 = vector.shape_cast %12 : vector<1x8x128xf32> to vector<8x128xf32>
    %14 = arith.addf %13, %5#1 : vector<8x128xf32>
    %c1_10 = arith.constant 1 : index
    %c0_11 = arith.constant 0 : index
    %c0_12 = arith.constant 0 : index
    %15 = vector.load %arg5[%c1_10, %c0_11, %c0_12] : memref<4x8x128xf32, #tpu.memory_space<vmem>>, vector<1x8x128xf32>
    %16 = vector.shape_cast %15 : vector<1x8x128xf32> to vector<8x128xf32>
    %17 = vector.shape_cast %14 : vector<8x128xf32> to vector<1x8x128xf32>
    tpu.vector_store %arg5[%c1_10, %c0_11, %c0_12], %17 {strides = array<i32>} : memref<4x8x128xf32, #tpu.memory_space<vmem>>, vector<1x8x128xf32>,
    %c2 = arith.constant 2 : index
    %c0_13 = arith.constant 0 : index
    %c0_14 = arith.constant 0 : index
    %18 = vector.load %arg5[%c2, %c0_13, %c0_14] : memref<4x8x128xf32, #tpu.memory_space<vmem>>, vector<1x8x128xf32>
    %19 = vector.shape_cast %18 : vector<1x8x128xf32> to vector<8x128xf32>
    %20 = arith.addf %19, %5#2 : vector<8x128xf32>
    %c2_15 = arith.constant 2 : index
    %c0_16 = arith.constant 0 : index
    %c0_17 = arith.constant 0 : index
    %21 = vector.load %arg5[%c2_15, %c0_16, %c0_17] : memref<4x8x128xf32, #tpu.memory_space<vmem>>, vector<1x8x128xf32>
    %22 = vector.shape_cast %21 : vector<1x8x128xf32> to vector<8x128xf32>
    %23 = vector.shape_cast %20 : vector<8x128xf32> to vector<1x8x128xf32>
    tpu.vector_store %arg5[%c2_15, %c0_16, %c0_17], %23 {strides = array<i32>} : memref<4x8x128xf32, #tpu.memory_space<vmem>>, vector<1x8x128xf32>,
    %c3 = arith.constant 3 : index
    %c0_18 = arith.constant 0 : index
    %c0_19 = arith.constant 0 : index
    %24 = vector.load %arg5[%c3, %c0_18, %c0_19] : memref<4x8x128xf32, #tpu.memory_space<vmem>>, vector<1x8x128xf32>
    %25 = vector.shape_cast %24 : vector<1x8x128xf32> to vector<8x128xf32>
    %26 = arith.addf %25, %5#3 : vector<8x128xf32>
    %c3_20 = arith.constant 3 : index
    %c0_21 = arith.constant 0 : index
    %c0_22 = arith.constant 0 : index
    %27 = vector.load %arg5[%c3_20, %c0_21, %c0_22] : memref<4x8x128xf32, #tpu.memory_space<vmem>>, vector<1x8x128xf32>
    %28 = vector.shape_cast %27 : vector<1x8x128xf32> to vector<8x128xf32>
    %29 = vector.shape_cast %26 : vector<8x128xf32> to vector<1x8x128xf32>
    tpu.vector_store %arg5[%c3_20, %c0_21, %c0_22], %29 {strides = array<i32>} : memref<4x8x128xf32, #tpu.memory_space<vmem>>, vector<1x8x128xf32>,
    return
  }
  func.func @transform_0(%arg0: i32, %arg1: i32) -> (i32, i32) {
    %c1_i32 = arith.constant 1 : i32
    %0 = arith.muli %arg0, %c1_i32 : i32
    %1 = arith.addi %0, %arg1 : i32
    %c0_i32 = arith.constant 0 : i32
    %c0_i32_0 = arith.constant 0 : i32
    return %1, %c0_i32 : i32, i32
  }
  func.func @transform_1(%arg0: i32, %arg1: i32) -> (i32, i32) {
    %c1_i32 = arith.constant 1 : i32
    %0 = arith.muli %arg0, %c1_i32 : i32
    %1 = arith.addi %0, %arg1 : i32
    %c0_i32 = arith.constant 0 : i32
    %c0_i32_0 = arith.constant 0 : i32
    return %1, %c0_i32 : i32, i32
  }
  func.func @transform_2(%arg0: i32, %arg1: i32) -> (i32, i32) {
    %c1_i32 = arith.constant 1 : i32
    %0 = arith.muli %arg0, %c1_i32 : i32
    %1 = arith.addi %0, %arg1 : i32
    %c0_i32 = arith.constant 0 : i32
    %c0_i32_0 = arith.constant 0 : i32
    return %1, %c0_i32 : i32, i32
  }
  func.func @transform_3(%arg0: i32, %arg1: i32) -> (i32, i32, i32) {
    %c0_i32 = arith.constant 0 : i32
    %c0_i32_0 = arith.constant 0 : i32
    %c0_i32_1 = arith.constant 0 : i32
    return %arg0, %c0_i32, %c0_i32_0 : i32, i32, i32
  }
}

</mosaic_0001>

<llo_original>
// kernel: tpu_custom_call.1
$region0: #{tpu_custom_call.1}
  #allocation0 [shape = 'u32[]', space=smem, size = 0x4, offset = 0x4, fixed_abs, tag = 'smem constant byte address 0x4 - core index']
  #allocation1 [shape = 'u32[144,128]{1,0:T(1,128)}', space=vmem, size = 0x12000, scoped, tag = 'internal scratch']
  %s0 = inlined_call_operand.hbm [shape: f32[1536,128], index: 0, kind: input, shape index: {}]
  %s1 = inlined_call_operand.hbm [shape: u8[1536,128], index: 1, kind: input, shape index: {}]
  %s2 = inlined_call_operand.hbm [shape: u8[1536,128], index: 2, kind: input, shape index: {}]
  %s3 = inlined_call_operand.hbm [shape: f32[8,8,128], index: 3, kind: output, shape index: {}]
  %s4 = sld [smem:[#allocation0]]
  $region68: #{tpu_custom_call.1} parent=0
    _
  %s6 = ssub.s32 1, %s4
  %s7 = scalar_select 0, %s6, %s4
  $region1: #{tpu_custom_call.1} parent=0
    #allocation2 [shape = 'u8[786432]{0}', space=vmem, size = 0xc0000, scoped, tag = 'input window, operand 0']
    #allocation3 [shape = 's32[2]{0}', space=sflag, size = 0x8, scoped, tag = 'scoped memory for tpu_custom_call.1']
    #allocation4 [shape = 's32[2]{0}', space=sflag, size = 0x8, scoped, tag = 'scoped memory for tpu_custom_call.1']
    #allocation5 [shape = 'u8[196608]{0}', space=vmem, size = 0x30000, scoped, tag = 'input window, operand 1']
    #allocation6 [shape = 's32[2]{0}', space=sflag, size = 0x8, scoped, tag = 'scoped memory for tpu_custom_call.1']
    #allocation7 [shape = 'u8[196608]{0}', space=vmem, size = 0x30000, scoped, tag = 'input window, operand 2']
    #allocation8 [shape = 'u8[32768]{0}', space=vmem, size = 0x8000, scoped, tag = 'output window, operand 0']
    %8 = vsyncpa [#allocation3], 0
    %s9 = scalar_lea.sflag [#allocation3], 1
    %10 = vsyncpa %s9, 0
    %11 = vsyncpa [#allocation6], 0
    %s12 = scalar_lea.sflag [#allocation6], 1
    %13 = vsyncpa %s12, 0
    %14 = vsyncpa [#allocation4], 0
    %s15 = scalar_lea.sflag [#allocation4], 1
    %16 = vsyncpa %s15, 0
    loop: start=0, step=1, limit=4
    $region2: #{tpu_custom_call.1} parent=1 // loop_pre_header
      _
    $region3: #{tpu_custom_call.1} parent=1 // loop_header
      %s18 = sphi 0, %s22
      %p19 = scmp.ge.s32.totalorder %s18, 4
      %s25 = sphi 0, %s37
      %s26 = sphi 0, %s33
      %s27 = sphi 0, %s25
      %s28 = sphi 0, %s26
      %s29 = sphi 0, %s27
      %s30 = sphi 0, %s28
      %s42 = sphi 0, %s44
      %s45 = sphi 0, %s42
      %s46 = sphi 0, %s45
      %s62 = sphi 0, %s46
      %s70 = sphi 0, %s72
      %s73 = sphi 0, %s70
      %s74 = sphi 0, %s73
      %s90 = sphi 0, %s74
      %s98 = sphi 0, %s100
      %s101 = sphi 0, %s98
      %s102 = sphi 0, %s101
      %s118 = sphi 0, %s102
      %s124 = sphi 0, %s126
      %s127 = sphi 0, %s124
      %s128 = sphi 0, %s127
      %s144 = sphi 0, %s128
    $region4: #{tpu_custom_call.1} parent=1 // loop_header_branch
      %21 = sbr.rel (%p19) target = $region8
    $region5: #{tpu_custom_call.1} parent=1 // loop_body
      %s23 = ssub.s32 %s18, 1
      %s24 = ssub.s32 %s18, 2
      %s31 = sadd.s32 1, %s26
      %p32 = scmp.ge.s32.totalorder %s31, 1
      %s33 = scalar_select %p32, 0, %s31
      %s34 = sadd.s32 1, %s25
      %s35 = scalar_select %p32, %s34, %s25
      %p36 = scmp.ge.s32.totalorder %s35, 2
      %s37 = scalar_select %p36, 0, %s35
      %s38 = sadd.s32 %s25, %s26
      %s39 = sadd.s32 %s37, %s33
      %s40 = ssub.s32 %s38, %s39
      %p41 = scmp.eq.s32.totalorder %s40, 0
      %s43 = sadd.s32 %s42, 1
      %s44 = scalar_select %p41, %s42, %s43
      %p47 = pneg %p41
      %p48 = scmp.eq.s32.totalorder %s18, 1
      %p49 = por %p47, %p48
      %p50 = scmp.ne.s32.totalorder %s42, %s45
      %p51 = scmp.eq.s32.totalorder %s18, 0
      %p52 = por %p50, %p51
      %p53 = scmp.ne.s32.totalorder %s42, %s45
      %p54 = scmp.eq.s32.totalorder %s23, 1
      %p55 = por %p53, %p54
      %p56 = scmp.ne.s32.totalorder %s45, %s46
      %p57 = scmp.eq.s32.totalorder %s23, 0
      %p58 = por %p56, %p57
      %p59 = scmp.ne.s32.totalorder %s45, %s46
      %p60 = scmp.eq.s32.totalorder %s24, 1
      %p61 = por %p59, %p60
      %p63 = scmp.ne.s32.totalorder %s46, %s62
      %p64 = scmp.eq.s32.totalorder %s24, 0
      %p65 = por %p63, %p64
      %s66 = sadd.s32 %s25, %s26
      %s67 = sadd.s32 %s37, %s33
      %s68 = ssub.s32 %s66, %s67
      %p69 = scmp.eq.s32.totalorder %s68, 0
      %s71 = sadd.s32 %s70, 1
      %s72 = scalar_select %p69, %s70, %s71
      %p75 = pneg %p69
      %p76 = scmp.eq.s32.totalorder %s18, 1
      %p77 = por %p75, %p76
      %p78 = scmp.ne.s32.totalorder %s70, %s73
      %p79 = scmp.eq.s32.totalorder %s18, 0
      %p80 = por %p78, %p79
      %p81 = scmp.ne.s32.totalorder %s70, %s73
      %p82 = scmp.eq.s32.totalorder %s23, 1
      %p83 = por %p81, %p82
      %p84 = scmp.ne.s32.totalorder %s73, %s74
      %p85 = scmp.eq.s32.totalorder %s23, 0
      %p86 = por %p84, %p85
      %p87 = scmp.ne.s32.totalorder %s73, %s74
      %p88 = scmp.eq.s32.totalorder %s24, 1
      %p89 = por %p87, %p88
      %p91 = scmp.ne.s32.totalorder %s74, %s90
      %p92 = scmp.eq.s32.totalorder %s24, 0
      %p93 = por %p91, %p92
      %s94 = sadd.s32 %s25, %s26
      %s95 = sadd.s32 %s37, %s33
      %s96 = ssub.s32 %s94, %s95
      %p97 = scmp.eq.s32.totalorder %s96, 0
      %s99 = sadd.s32 %s98, 1
      %s100 = scalar_select %p97, %s98, %s99
      %p103 = pneg %p97
      %p104 = scmp.eq.s32.totalorder %s18, 1
      %p105 = por %p103, %p104
      %p106 = scmp.ne.s32.totalorder %s98, %s101
      %p107 = scmp.eq.s32.totalorder %s18, 0
      %p108 = por %p106, %p107
      %p109 = scmp.ne.s32.totalorder %s98, %s101
      %p110 = scmp.eq.s32.totalorder %s23, 1
      %p111 = por %p109, %p110
      %p112 = scmp.ne.s32.totalorder %s101, %s102
      %p113 = scmp.eq.s32.totalorder %s23, 0
      %p114 = por %p112, %p113
      %p115 = scmp.ne.s32.totalorder %s101, %s102
      %p116 = scmp.eq.s32.totalorder %s24, 1
      %p117 = por %p115, %p116
      %p119 = scmp.ne.s32.totalorder %s102, %s118
      %p120 = scmp.eq.s32.totalorder %s24, 0
      %p121 = por %p119, %p120
      %s122 = ssub.s32 %s25, %s37
      %p123 = scmp.eq.s32.totalorder %s122, 0
      %s125 = sadd.s32 %s124, 1
      %s126 = scalar_select %p123, %s124, %s125
      %p129 = pneg %p123
      %p130 = scmp.eq.s32.totalorder %s18, 1
      %p131 = por %p129, %p130
      %p132 = scmp.ne.s32.totalorder %s124, %s127
      %p133 = scmp.eq.s32.totalorder %s18, 0
      %p134 = por %p132, %p133
      %p135 = scmp.ne.s32.totalorder %s124, %s127
      %p136 = scmp.eq.s32.totalorder %s23, 1
      %p137 = por %p135, %p136
      %p138 = scmp.ne.s32.totalorder %s127, %s128
      %p139 = scmp.eq.s32.totalorder %s23, 0
      %p140 = por %p138, %p139
      %p141 = scmp.ne.s32.totalorder %s127, %s128
      %p142 = scmp.eq.s32.totalorder %s24, 1
      %p143 = por %p141, %p142
      %p145 = scmp.ne.s32.totalorder %s128, %s144
      %p146 = scmp.eq.s32.totalorder %s24, 0
      %p147 = por %p145, %p146
      %p148 = scmp.le.s32.totalorder 1, %s18
      %p149 = scmp.lt.s32.totalorder %s18, 3
      %p150 = pnand %p148, %p149
      %p151 = pneg %p150
      // Predicated region
      $region9: #{tpu_custom_call.1} parent=5 // pred_check
        _
      $region10: #{tpu_custom_call.1} parent=5 // pred_check_branch
        %153 = sbr.rel (%p150) target = $region12
      $region11: #{tpu_custom_call.1} parent=5 // pred_region
        %s154 = ssub.s32 %s18, 1
      $region12: #{tpu_custom_call.1} parent=5 // pred_fallthru
        _
      %p155 = scmp.lt.s32.totalorder %s18, 2
      // Predicated region
      $region13: #{tpu_custom_call.1} parent=5 // pred_check
        %p156 = pneg %p155
      $region14: #{tpu_custom_call.1} parent=5 // pred_check_branch
        %158 = sbr.rel (%p156) target = $region16
      $region15: #{tpu_custom_call.1} parent=5 // pred_region
        // Predicated region
        $region17: #{tpu_custom_call.1} parent=15 // pred_check
          %p159 = pneg %p52
        $region18: #{tpu_custom_call.1} parent=15 // pred_check_branch
          %161 = sbr.rel (%p159) target = $region20
        $region19: #{tpu_custom_call.1} parent=15 // pred_region
          %s162 = sand.u32 %s42, 1
          %s163 = scalar_lea.sflag [#allocation3], %s162
          %s164 = sand.u32 %s42, 1
          %s165 = smul.addr %s164, 768
          %s166 = scalar_lea.vmem [#allocation2], %s165
          %s167 = sadd.s32 %s25, %s26
          %s168 = smul.u32 96, %s167
          %s170 = ssub.s32 12288, 12288
          %171 = vsyncadd %s163, %s170
          %s172 = smul.addr %s168, 128
          %s173 = scalar_lea.hbm %s0, %s172
          %s174 = sshll.u32 %s166, 4
          %s175 = int_to_ptr.vmem [resolvable:$true] %s174
          %180 = dma.hbm_to_vmem [thread:$0]  %s173, 12288, %s175, %s163, 128, 128, 8
        $region20: #{tpu_custom_call.1} parent=15 // pred_fallthru
          _
        // Predicated region
        $region21: #{tpu_custom_call.1} parent=15 // pred_check
          %p181 = pneg %p80
        $region22: #{tpu_custom_call.1} parent=15 // pred_check_branch
          %183 = sbr.rel (%p181) target = $region24
        $region23: #{tpu_custom_call.1} parent=15 // pred_region
          %s184 = sand.u32 %s18, 1
          %s185 = scalar_lea.sflag [#allocation6], %s184
          %s186 = sand.u32 %s70, 1
          %s187 = smul.addr %s186, 192
          %s188 = scalar_lea.vmem [#allocation5], %s187
          %s189 = sadd.s32 %s25, %s26
          %s190 = smul.u32 24, %s189
          %s192 = ssub.s32 3072, 3072
          %193 = vsyncadd %s185, %s192
          %s194 = smul.addr %s190, 128
          %s195 = scalar_lea.hbm %s1, %s194
          %s196 = sshll.u32 %s188, 4
          %s197 = int_to_ptr.vmem [resolvable:$true] %s196
          %202 = dma.hbm_to_vmem [thread:$0]  %s195, 3072, %s197, %s185, 128, 128, 8
        $region24: #{tpu_custom_call.1} parent=15 // pred_fallthru
          _
        // Predicated region
        $region25: #{tpu_custom_call.1} parent=15 // pred_check
          %p203 = pneg %p108
        $region26: #{tpu_custom_call.1} parent=15 // pred_check_branch
          %205 = sbr.rel (%p203) target = $region28
        $region27: #{tpu_custom_call.1} parent=15 // pred_region
          %s206 = sand.u32 %s18, 1
          %s207 = scalar_lea.sflag [#allocation6], %s206
          %s208 = sand.u32 %s98, 1
          %s209 = smul.addr %s208, 192
          %s210 = scalar_lea.vmem [#allocation7], %s209
          %s211 = sadd.s32 %s25, %s26
          %s212 = smul.u32 24, %s211
          %s214 = ssub.s32 3072, 3072
          %215 = vsyncadd %s207, %s214
          %s216 = smul.addr %s212, 128
          %s217 = scalar_lea.hbm %s2, %s216
          %s218 = sshll.u32 %s210, 4
          %s219 = int_to_ptr.vmem [resolvable:$true] %s218
          %224 = dma.hbm_to_vmem [thread:$0]  %s217, 3072, %s219, %s207, 128, 128, 8
        $region28: #{tpu_custom_call.1} parent=15 // pred_fallthru
          _
      $region16: #{tpu_custom_call.1} parent=5 // pred_fallthru
        _
      %p225 = scmp.le.s32.totalorder 1, %s18
      %p226 = scmp.lt.s32.totalorder %s18, 3
      %p227 = pnand %p225, %p226
      %p228 = pneg %p227
      // Predicated region
      $region29: #{tpu_custom_call.1} parent=5 // pred_check
        _
      $region30: #{tpu_custom_call.1} parent=5 // pred_check_branch
        %230 = sbr.rel (%p227) target = $region32
      $region31: #{tpu_custom_call.1} parent=5 // pred_region
        %s231 = ssub.s32 %s18, 1
        %s232 = sand.u32 %s45, 1
        %s233 = scalar_lea.sflag [#allocation3], %s232
        %s234 = sand.u32 %s45, 1
        %s235 = smul.addr %s234, 768
        %s236 = scalar_lea.vmem [#allocation2], %s235
        // Predicated region
        $region33: #{tpu_custom_call.1} parent=31 // pred_check
          %p237 = pneg %p58
        $region34: #{tpu_custom_call.1} parent=31 // pred_check_branch
          %239 = sbr.rel (%p237) target = $region36
        $region35: #{tpu_custom_call.1} parent=31 // pred_region
          %240 = dma.done %s233, 12288
        $region36: #{tpu_custom_call.1} parent=31 // pred_fallthru
          _
        %s241 = sand.u32 %s23, 1
        %s242 = scalar_lea.sflag [#allocation6], %s241
        %s243 = sand.u32 %s73, 1
        %s244 = smul.addr %s243, 192
        %s245 = scalar_lea.vmem [#allocation5], %s244
        // Predicated region
        $region37: #{tpu_custom_call.1} parent=31 // pred_check
          %p246 = pneg %p86
        $region38: #{tpu_custom_call.1} parent=31 // pred_check_branch
          %248 = sbr.rel (%p246) target = $region40
        $region39: #{tpu_custom_call.1} parent=31 // pred_region
          %249 = dma.done %s242, 3072
        $region40: #{tpu_custom_call.1} parent=31 // pred_fallthru
          _
        %s250 = sand.u32 %s23, 1
        %s251 = scalar_lea.sflag [#allocation6], %s250
        %s252 = sand.u32 %s101, 1
        %s253 = smul.addr %s252, 192
        %s254 = scalar_lea.vmem [#allocation7], %s253
        // Predicated region
        $region41: #{tpu_custom_call.1} parent=31 // pred_check
          %p255 = pneg %p114
        $region42: #{tpu_custom_call.1} parent=31 // pred_check_branch
          %257 = sbr.rel (%p255) target = $region44
        $region43: #{tpu_custom_call.1} parent=31 // pred_region
          %258 = dma.done %s251, 3072
        $region44: #{tpu_custom_call.1} parent=31 // pred_fallthru
          _
        %s259 = sand.u32 %s45, 1
        %s260 = scalar_lea.sflag [#allocation3], %s259
        %s261 = sand.u32 %s45, 1
        %s262 = smul.addr %s261, 768
        %s263 = scalar_lea.vmem [#allocation2], %s262
        %p264 = pneg %p58
        %p265 = pneg %p55
        %s266 = sand.u32 %s23, 1
        %s267 = scalar_lea.sflag [#allocation6], %s266
        %s268 = sand.u32 %s73, 1
        %s269 = smul.addr %s268, 192
        %s270 = scalar_lea.vmem [#allocation5], %s269
        %p271 = pneg %p86
        %p272 = pneg %p83
        %s273 = sand.u32 %s23, 1
        %s274 = scalar_lea.sflag [#allocation6], %s273
        %s275 = sand.u32 %s101, 1
        %s276 = smul.addr %s275, 192
        %s277 = scalar_lea.vmem [#allocation7], %s276
        %p278 = pneg %p114
        %p279 = pneg %p111
        %p280 = pneg %p140
        %p281 = pneg %p137
        %s282 = sand.u32 %s127, 1
        %s283 = scalar_lea.sflag [#allocation4], %s282
        %s284 = sand.u32 %s127, 1
        %s285 = smul.addr %s284, 32
        %s286 = scalar_lea.vmem [#allocation8], %s285
        %s287 = sadd.s32 %s27, %s28
        %s288 = smul.u32 96, %s287
        %s289 = sadd.s32 %s27, %s28
        %s290 = smul.u32 24, %s289
        %s291 = sadd.s32 %s27, %s28
        %s292 = smul.u32 24, %s291
        %s293 = smul.u32 4, %s27
        %p294 = scmp.eq.s32.totalorder %s28, 0
        // Predicated region
        $region45: #{tpu_custom_call.1} parent=31 // pred_check
          %p295 = pneg %p294
        $region46: #{tpu_custom_call.1} parent=31 // pred_check_branch
          %297 = sbr.rel (%p295) target = $region48
        $region47: #{tpu_custom_call.1} parent=31 // pred_region
          %298 = vst [vmem:[%s286] sm:$0xff] 0.0
          %299 = vst [vmem:[%s286 + $0x8] sm:$0xff] 0.0
          %300 = vst [vmem:[%s286 + $0x10] sm:$0xff] 0.0
          %301 = vst [vmem:[%s286 + $0x18] sm:$0xff] 0.0
        $region48: #{tpu_custom_call.1} parent=31 // pred_fallthru
          _
        loop: start=0, step=1, limit=12
        $region49: #{tpu_custom_call.1} parent=31 // loop_pre_header
          _
        $region50: #{tpu_custom_call.1} parent=31 // loop_header
          %s303 = sphi 0, %s307
          %p304 = scmp.ge.s32.totalorder %s303, 12
          %v308 = vphi 0.0, %v571
          %v309 = vphi 0.0, %v587
          %v310 = vphi 0.0, %v595
          %v311 = vphi 0.0, %v603
        $region51: #{tpu_custom_call.1} parent=31 // loop_header_branch
          %306 = sbr.rel (%p304) target = $region55
        $region52: #{tpu_custom_call.1} parent=31 // loop_body
          %s312 = smul.u32 %s303, 64
          %s313 = scalar_lea.vmem %s236, %s312 [#allocation2]
          %v314 = vld [vmem:[%s313] sm:$0xff]
          %v315 = vld [vmem:[%s313 + $0x8] sm:$0xff]
          %v316 = vld [vmem:[%s313 + $0x10] sm:$0xff]
          %v317 = vld [vmem:[%s313 + $0x18] sm:$0xff]
          %v318 = vld [vmem:[%s313 + $0x20] sm:$0xff]
          %v319 = vld [vmem:[%s313 + $0x28] sm:$0xff]
          %v320 = vld [vmem:[%s313 + $0x30] sm:$0xff]
          %v321 = vld [vmem:[%s313 + $0x38] sm:$0xff]
          %s322 = sshra.s32 %s312, 5
          %s323 = sand.u32 %s312, 31
          %s324 = smul.addr %s322, 8
          %s325 = scalar_lea.vmem %s245, %s324 [#allocation5]
          %v326 = vld [vmem:[%s325] sm:$0xff]
          %v327 = vld [vmem:[%s325 + $0x8] sm:$0xff]
          %v328 = vunpack.c.0.s8 %v326
          %v329 = vunpack.c.1.s8 %v326
          %v330 = vunpack.c.2.s8 %v326
          %v331 = vunpack.c.3.s8 %v326
          %v332 = vunpack.c.0.s8 %v327
          %v333 = vunpack.c.1.s8 %v327
          %v334 = vunpack.c.2.s8 %v327
          %v335 = vunpack.c.3.s8 %v327
          %v336 = vand.u32 %v328, 255
          %v337 = vand.u32 %v329, 255
          %v338 = vand.u32 %v330, 255
          %v339 = vand.u32 %v331, 255
          %v340 = vand.u32 %v332, 255
          %v341 = vand.u32 %v333, 255
          %v342 = vand.u32 %v334, 255
          %v343 = vand.u32 %v335, 255
          %v344 = vcvt.s32.f32 %v336
          %v345 = vcvt.s32.f32 %v337
          %v346 = vcvt.s32.f32 %v338
          %v347 = vcvt.s32.f32 %v339
          %v348 = vcvt.s32.f32 %v340
          %v349 = vcvt.s32.f32 %v341
          %v350 = vcvt.s32.f32 %v342
          %v351 = vcvt.s32.f32 %v343
          %s352 = smul.addr %s322, 8
          %s353 = scalar_lea.vmem %s254, %s352 [#allocation7]
          %v354 = vld [vmem:[%s353] sm:$0xff]
          %v355 = vld [vmem:[%s353 + $0x8] sm:$0xff]
          %v356 = vunpack.c.0.s8 %v354
          %v357 = vunpack.c.1.s8 %v354
          %v358 = vunpack.c.2.s8 %v354
          %v359 = vunpack.c.3.s8 %v354
          %v360 = vunpack.c.0.s8 %v355
          %v361 = vunpack.c.1.s8 %v355
          %v362 = vunpack.c.2.s8 %v355
          %v363 = vunpack.c.3.s8 %v355
          %v364 = vand.u32 %v356, 255
          %v365 = vand.u32 %v357, 255
          %v366 = vand.u32 %v358, 255
          %v367 = vand.u32 %v359, 255
          %v368 = vand.u32 %v360, 255
          %v369 = vand.u32 %v361, 255
          %v370 = vand.u32 %v362, 255
          %v371 = vand.u32 %v363, 255
          %v372 = vcvt.s32.f32 %v364
          %v373 = vcvt.s32.f32 %v365
          %v374 = vcvt.s32.f32 %v366
          %v375 = vcvt.s32.f32 %v367
          %v376 = vcvt.s32.f32 %v368
          %v377 = vcvt.s32.f32 %v369
          %v378 = vcvt.s32.f32 %v370
          %v379 = vcvt.s32.f32 %v371
          %v380 = vmax.f32 %v314, 0.0
          %v381 = vmax.f32 %v315, 0.0
          %v382 = vmax.f32 %v316, 0.0
          %v383 = vmax.f32 %v317, 0.0
          %v384 = vmax.f32 %v318, 0.0
          %v385 = vmax.f32 %v319, 0.0
          %v386 = vmax.f32 %v320, 0.0
          %v387 = vmax.f32 %v321, 0.0
          %v388 = vmul.f32 %v314, %v344
          %v389 = vmul.f32 %v315, %v345
          %v390 = vmul.f32 %v316, %v346
          %v391 = vmul.f32 %v317, %v347
          %v392 = vmul.f32 %v318, %v348
          %v393 = vmul.f32 %v319, %v349
          %v394 = vmul.f32 %v320, %v350
          %v395 = vmul.f32 %v321, %v351
          %v396 = vsub.f32 %v380, %v388
          %v397 = vsub.f32 %v381, %v389
          %v398 = vsub.f32 %v382, %v390
          %v399 = vsub.f32 %v383, %v391
          %v400 = vsub.f32 %v384, %v392
          %v401 = vsub.f32 %v385, %v393
          %v402 = vsub.f32 %v386, %v394
          %v403 = vsub.f32 %v387, %v395
          %v404 = vand.u32 2147483647, %v314
          %v405 = vand.u32 2147483647, %v315
          %v406 = vand.u32 2147483647, %v316
          %v407 = vand.u32 2147483647, %v317
          %v408 = vand.u32 2147483647, %v318
          %v409 = vand.u32 2147483647, %v319
          %v410 = vand.u32 2147483647, %v320
          %v411 = vand.u32 2147483647, %v321
          %v412 = vsub.f32 0.0, %v404
          %v413 = vsub.f32 0.0, %v405
          %v414 = vsub.f32 0.0, %v406
          %v415 = vsub.f32 0.0, %v407
          %v416 = vsub.f32 0.0, %v408
          %v417 = vsub.f32 0.0, %v409
          %v418 = vsub.f32 0.0, %v410
          %v419 = vsub.f32 0.0, %v411
          %v420 = vmul.f32 %v412, 1.442695
          %v421 = vpow.pop %v420
          %v422 = vmul.f32 %v413, 1.442695
          %v423 = vpow.pop %v422
          %v424 = vmul.f32 %v414, 1.442695
          %v425 = vpow.pop %v424
          %v426 = vmul.f32 %v415, 1.442695
          %v427 = vpow.pop %v426
          %v428 = vmul.f32 %v416, 1.442695
          %v429 = vpow.pop %v428
          %v430 = vmul.f32 %v417, 1.442695
          %v431 = vpow.pop %v430
          %v432 = vmul.f32 %v418, 1.442695
          %v433 = vpow.pop %v432
          %v434 = vmul.f32 %v419, 1.442695
          %v435 = vpow.pop %v434
          %v436 = vadd.f32 %v421, 1.0
          %v437 = vlog2.pop %v436
          %v438 = vmul.f32 %v437, 0.6931472
          %v439 = vmul.f32 -0.5, %v421
          %v440 = vadd.f32 %v439, 1.0
          %v441 = vmul.f32 %v440, %v421
          %v442 = vand.u32 2147483647, %v421
          %vm443 = vcmp.lt.f32.partialorder %v442, 0.0004427343
          %v444 = vsel %vm443, %v441, %v438
          %v445 = vadd.f32 %v423, 1.0
          %v446 = vlog2.pop %v445
          %v447 = vmul.f32 %v446, 0.6931472
          %v448 = vmul.f32 -0.5, %v423
          %v449 = vadd.f32 %v448, 1.0
          %v450 = vmul.f32 %v449, %v423
          %v451 = vand.u32 2147483647, %v423
          %vm452 = vcmp.lt.f32.partialorder %v451, 0.0004427343
          %v453 = vsel %vm452, %v450, %v447
          %v454 = vadd.f32 %v425, 1.0
          %v455 = vlog2.pop %v454
          %v456 = vmul.f32 %v455, 0.6931472
          %v457 = vmul.f32 -0.5, %v425
          %v458 = vadd.f32 %v457, 1.0
          %v459 = vmul.f32 %v458, %v425
          %v460 = vand.u32 2147483647, %v425
          %vm461 = vcmp.lt.f32.partialorder %v460, 0.0004427343
          %v462 = vsel %vm461, %v459, %v456
          %v463 = vadd.f32 %v427, 1.0
          %v464 = vlog2.pop %v463
          %v465 = vmul.f32 %v464, 0.6931472
          %v466 = vmul.f32 -0.5, %v427
          %v467 = vadd.f32 %v466, 1.0
          %v468 = vmul.f32 %v467, %v427
          %v469 = vand.u32 2147483647, %v427
          %vm470 = vcmp.lt.f32.partialorder %v469, 0.0004427343
          %v471 = vsel %vm470, %v468, %v465
          %v472 = vadd.f32 %v429, 1.0
          %v473 = vlog2.pop %v472
          %v474 = vmul.f32 %v473, 0.6931472
          %v475 = vmul.f32 -0.5, %v429
          %v476 = vadd.f32 %v475, 1.0
          %v477 = vmul.f32 %v476, %v429
          %v478 = vand.u32 2147483647, %v429
          %vm479 = vcmp.lt.f32.partialorder %v478, 0.0004427343
          %v480 = vsel %vm479, %v477, %v474
          %v481 = vadd.f32 %v431, 1.0
          %v482 = vlog2.pop %v481
          %v483 = vmul.f32 %v482, 0.6931472
          %v484 = vmul.f32 -0.5, %v431
          %v485 = vadd.f32 %v484, 1.0
          %v486 = vmul.f32 %v485, %v431
          %v487 = vand.u32 2147483647, %v431
          %vm488 = vcmp.lt.f32.partialorder %v487, 0.0004427343
          %v489 = vsel %vm488, %v486, %v483
          %v490 = vadd.f32 %v433, 1.0
          %v491 = vlog2.pop %v490
          %v492 = vmul.f32 %v491, 0.6931472
          %v493 = vmul.f32 -0.5, %v433
          %v494 = vadd.f32 %v493, 1.0
          %v495 = vmul.f32 %v494, %v433
          %v496 = vand.u32 2147483647, %v433
          %vm497 = vcmp.lt.f32.partialorder %v496, 0.0004427343
          %v498 = vsel %vm497, %v495, %v492
          %v499 = vadd.f32 %v435, 1.0
          %v500 = vlog2.pop %v499
          %v501 = vmul.f32 %v500, 0.6931472
          %v502 = vmul.f32 -0.5, %v435
          %v503 = vadd.f32 %v502, 1.0
          %v504 = vmul.f32 %v503, %v435
          %v505 = vand.u32 2147483647, %v435
          %vm506 = vcmp.lt.f32.partialorder %v505, 0.0004427343
          %v507 = vsel %vm506, %v504, %v501
          %v508 = vadd.f32 %v396, %v444
          %v509 = vadd.f32 %v397, %v453
          %v510 = vadd.f32 %v398, %v462
          %v511 = vadd.f32 %v399, %v471
          %v512 = vadd.f32 %v400, %v480
          %v513 = vadd.f32 %v401, %v489
          %v514 = vadd.f32 %v402, %v498
          %v515 = vadd.f32 %v403, %v507
          %vm516 = vcmp.eq.f32.partialorder %v344, 1.0
          %vm517 = vcmp.eq.f32.partialorder %v345, 1.0
          %vm518 = vcmp.eq.f32.partialorder %v346, 1.0
          %vm519 = vcmp.eq.f32.partialorder %v347, 1.0
          %vm520 = vcmp.eq.f32.partialorder %v348, 1.0
          %vm521 = vcmp.eq.f32.partialorder %v349, 1.0
          %vm522 = vcmp.eq.f32.partialorder %v350, 1.0
          %vm523 = vcmp.eq.f32.partialorder %v351, 1.0
          %v524 = vsel %vm516, 1, 0
          %v525 = vsel %vm517, 1, 0
          %v526 = vsel %vm518, 1, 0
          %v527 = vsel %vm519, 1, 0
          %v528 = vsel %vm520, 1, 0
          %v529 = vsel %vm521, 1, 0
          %v530 = vsel %vm522, 1, 0
          %v531 = vsel %vm523, 1, 0
          %v532 = vcvt.s32.f32 %v524
          %v533 = vcvt.s32.f32 %v525
          %v534 = vcvt.s32.f32 %v526
          %v535 = vcvt.s32.f32 %v527
          %v536 = vcvt.s32.f32 %v528
          %v537 = vcvt.s32.f32 %v529
          %v538 = vcvt.s32.f32 %v530
          %v539 = vcvt.s32.f32 %v531
          %v540 = vmul.f32 %v372, %v532
          %v541 = vmul.f32 %v373, %v533
          %v542 = vmul.f32 %v374, %v534
          %v543 = vmul.f32 %v375, %v535
          %v544 = vmul.f32 %v376, %v536
          %v545 = vmul.f32 %v377, %v537
          %v546 = vmul.f32 %v378, %v538
          %v547 = vmul.f32 %v379, %v539
          %v548 = vsub.f32 %v372, %v540
          %v549 = vsub.f32 %v373, %v541
          %v550 = vsub.f32 %v374, %v542
          %v551 = vsub.f32 %v375, %v543
          %v552 = vsub.f32 %v376, %v544
          %v553 = vsub.f32 %v377, %v545
          %v554 = vsub.f32 %v378, %v546
          %v555 = vsub.f32 %v379, %v547
          %v556 = vmul.f32 %v540, %v508
          %v557 = vmul.f32 %v541, %v509
          %v558 = vmul.f32 %v542, %v510
          %v559 = vmul.f32 %v543, %v511
          %v560 = vmul.f32 %v544, %v512
          %v561 = vmul.f32 %v545, %v513
          %v562 = vmul.f32 %v546, %v514
          %v563 = vmul.f32 %v547, %v515
          %v564 = vadd.f32 %v556, %v557
          %v565 = vadd.f32 %v564, %v558
          %v566 = vadd.f32 %v565, %v559
          %v567 = vadd.f32 %v566, %v560
          %v568 = vadd.f32 %v567, %v561
          %v569 = vadd.f32 %v568, %v562
          %v570 = vadd.f32 %v569, %v563
          %v571 = vadd.f32 %v308, %v570
          %v572 = vmul.f32 %v548, %v508
          %v573 = vmul.f32 %v549, %v509
          %v574 = vmul.f32 %v550, %v510
          %v575 = vmul.f32 %v551, %v511
          %v576 = vmul.f32 %v552, %v512
          %v577 = vmul.f32 %v553, %v513
          %v578 = vmul.f32 %v554, %v514
          %v579 = vmul.f32 %v555, %v515
          %v580 = vadd.f32 %v572, %v573
          %v581 = vadd.f32 %v580, %v574
          %v582 = vadd.f32 %v581, %v575
          %v583 = vadd.f32 %v582, %v576
          %v584 = vadd.f32 %v583, %v577
          %v585 = vadd.f32 %v584, %v578
          %v586 = vadd.f32 %v585, %v579
          %v587 = vadd.f32 %v309, %v586
          %v588 = vadd.f32 %v540, %v541
          %v589 = vadd.f32 %v588, %v542
          %v590 = vadd.f32 %v589, %v543
          %v591 = vadd.f32 %v590, %v544
          %v592 = vadd.f32 %v591, %v545
          %v593 = vadd.f32 %v592, %v546
          %v594 = vadd.f32 %v593, %v547
          %v595 = vadd.f32 %v310, %v594
          %v596 = vadd.f32 %v548, %v549
          %v597 = vadd.f32 %v596, %v550
          %v598 = vadd.f32 %v597, %v551
          %v599 = vadd.f32 %v598, %v552
          %v600 = vadd.f32 %v599, %v553
          %v601 = vadd.f32 %v600, %v554
          %v602 = vadd.f32 %v601, %v555
          %v603 = vadd.f32 %v311, %v602
        $region53: #{tpu_custom_call.1} parent=31 // loop_footer
          %s307 = sadd.s32 1, %s303
        $region54: #{tpu_custom_call.1} parent=31 // loop_footer_branch
          %302 = sbr.rel target = $region50
        $region55: #{tpu_custom_call.1} parent=31 // loop_exit
          _
        %v604 = vld [vmem:[%s286] sm:$0xff]
        %v605 = vadd.f32 %v604, %v308
        %606 = vst [vmem:[%s286] sm:$0xff] %v605
        %s607 = scalar_lea.vmem %s286, 8 [#allocation8]
        %v608 = vld [vmem:[%s607] sm:$0xff]
        %v609 = vadd.f32 %v608, %v309
        %610 = vst [vmem:[%s607] sm:$0xff] %v609
        %s611 = scalar_lea.vmem %s286, 16 [#allocation8]
        %v612 = vld [vmem:[%s611] sm:$0xff]
        %v613 = vadd.f32 %v612, %v310
        %614 = vst [vmem:[%s611] sm:$0xff] %v613
        %s615 = scalar_lea.vmem %s286, 24 [#allocation8]
        %v616 = vld [vmem:[%s615] sm:$0xff]
        %v617 = vadd.f32 %v616, %v311
        %618 = vst [vmem:[%s615] sm:$0xff] %v617
        %s619 = sand.u32 %s127, 1
        %s620 = scalar_lea.sflag [#allocation4], %s619
        %s621 = sand.u32 %s127, 1
        %s622 = smul.addr %s621, 32
        %s623 = scalar_lea.vmem [#allocation8], %s622
        // Predicated region
        $region56: #{tpu_custom_call.1} parent=31 // pred_check
          %p624 = pneg %p137
        $region57: #{tpu_custom_call.1} parent=31 // pred_check_branch
          %626 = sbr.rel (%p624) target = $region59
        $region58: #{tpu_custom_call.1} parent=31 // pred_region
          %s627 = smul.u32 4, %s27
          %s629 = ssub.s32 512, 512
          %630 = vsyncadd %s620, %s629
          %s631 = smul.addr %s627, 128
          %s632 = scalar_lea.hbm %s3, %s631
          %s633 = sshll.u32 %s623, 4
          %s634 = int_to_ptr.vmem [resolvable:$true] %s633
          %639 = dma.vmem_to_hbm [thread:$0]  %s634, 512, %s632, %s620, 128, 128, 8
        $region59: #{tpu_custom_call.1} parent=31 // pred_fallthru
          _
      $region32: #{tpu_custom_call.1} parent=5 // pred_fallthru
        _
      %p640 = scmp.le.s32.totalorder 2, %s18
      // Predicated region
      $region60: #{tpu_custom_call.1} parent=5 // pred_check
        %p641 = pneg %p640
      $region61: #{tpu_custom_call.1} parent=5 // pred_check_branch
        %643 = sbr.rel (%p641) target = $region63
      $region62: #{tpu_custom_call.1} parent=5 // pred_region
        %s644 = ssub.s32 %s18, 2
        // Predicated region
        $region64: #{tpu_custom_call.1} parent=62 // pred_check
          %p645 = pneg %p143
        $region65: #{tpu_custom_call.1} parent=62 // pred_check_branch
          %647 = sbr.rel (%p645) target = $region67
        $region66: #{tpu_custom_call.1} parent=62 // pred_region
          %s648 = sand.u32 %s128, 1
          %s649 = scalar_lea.sflag [#allocation4], %s648
          %s650 = sand.u32 %s128, 1
          %s651 = smul.addr %s650, 32
          %s652 = scalar_lea.vmem [#allocation8], %s651
          %653 = dma.done %s649, 512
        $region67: #{tpu_custom_call.1} parent=62 // pred_fallthru
          _
      $region63: #{tpu_custom_call.1} parent=5 // pred_fallthru
        _
    $region6: #{tpu_custom_call.1} parent=1 // loop_footer
      %s22 = sadd.s32 1, %s18
    $region7: #{tpu_custom_call.1} parent=1 // loop_footer_branch
      %17 = sbr.rel target = $region3
    $region8: #{tpu_custom_call.1} parent=1 // loop_exit
      _
    %654 = vsyncpa [#allocation3], 1
    %s655 = scalar_lea.sflag [#allocation3], 1
    %656 = vsyncpa %s655, 1
    %657 = vsyncpa [#allocation6], 1
    %s658 = scalar_lea.sflag [#allocation6], 1
    %659 = vsyncpa %s658, 1
    %660 = vsyncpa [#allocation4], 1
    %s661 = scalar_lea.sflag [#allocation4], 1
    %662 = vsyncpa %s661, 1

</llo_original>
